<compile_context>
chip_gen: v6e
topology: v6e:2x2x1
jax: 0.10.0
libtpu: 0.0.40
codegen_flags: <defaults>
</compile_context>

<pallas_src>
import jax
import jax.numpy as jnp
from jax import lax
from jax.experimental import pallas as pl
from jax.experimental.pallas import tpu as pltpu


def _round_up(n, m):
    return ((n + m - 1) // m) * m


def fm_kernel(x_ref, vt_ref, w_ref, nr_ref, b_ref, o_ref):
    """One batch tile of the FM forward pass.

    x_ref : (TB, D) input rows for this tile                 (VMEM)
    vt_ref: (K, D)  V.T, resident across the grid            (VMEM)
    w_ref : (1, D)  nn.Linear weight, resident               (VMEM)
    nr_ref: (1, D)  -0.5 * sum_k V_dk^2, resident            (VMEM)
    b_ref : (1, 1)  nn.Linear bias                           (SMEM scalar)
    o_ref : (1, TB) sigmoid(linear + interaction), batch on the lane axis
    """
    x = x_ref[...]                                            # (TB, D) f32

    # Contract dim 1 ("d") of both operands -> batch lands on the lane axis,
    # so all intermediates are lane-dense (no 128-lane padding of K=16).
    dn = (((1,), (1,)), ((), ()))

    xv = lax.dot_general(vt_ref[...], x, dn,
                         preferred_element_type=jnp.float32)   # (K, TB)
    lin = lax.dot_general(w_ref[...], x, dn,
                          preferred_element_type=jnp.float32)  # (1, TB)
    corr = lax.dot_general(nr_ref[...], x * x, dn,
                           preferred_element_type=jnp.float32)  # (1, TB) = -0.5*(x^2)·r

    # 0.5 * ||x V||^2 per batch element: square in (K, TB) layout and reduce
    # the K sublanes (XLU) straight into the (1, TB) output row.
    inter = 0.5 * jnp.sum(xv * xv, axis=0, keepdims=True)      # (1, TB)

    o_ref[...] = jax.nn.sigmoid(lin + corr + inter + b_ref[0, 0]).astype(o_ref.dtype)


def factorization_machine(x, w_lin, b_lin, V, *, block_b=32768):
    """x: (B, D) f32, w_lin: (1, D), b_lin: (1,) or (1, 1), V: (D, K) -> (B, 1)."""
    B, D = x.shape
    K = V.shape[1]

    # Batch tile: multiple of 128 (lane-dense output row), capped at
    # ceil(B/2) so large batches keep grid >= 2 (both v7x TCs), capped at
    # block_b so the double-buffered x tile stays a few MiB of VMEM.
    tb = min(block_b, _round_up(max(pl.cdiv(B, 2), 1), 128))
    grid = pl.cdiv(B, tb)

    # Tiny batches only (B < 128): pad a few rows so the single block fits.
    # Large batches use ragged last blocks with no padding pass over x.
    if B < tb:
        x = jnp.pad(x, ((0, tb - B), (0, 0)))

    # One-time parameter prep (D*K elements -- negligible).
    vt = V.T                                                   # (K, D)
    nr = (-0.5 * jnp.sum(V * V, axis=1))[None, :]              # (1, D) = -0.5 * r
    b2 = jnp.reshape(b_lin, (1, 1))                            # (1, 1)

    cost = pl.CostEstimate(
        flops=int(2 * B * D * (K + 2) + 4 * B * K),
        transcendentals=int(B),
        bytes_accessed=int(4 * (B * D + B + D * K + 2 * D + 1)),
    )

    out = pl.pallas_call(
        fm_kernel,
        out_shape=jax.ShapeDtypeStruct((grid, tb), jnp.float32),
        grid=(grid,),
        in_specs=[
            pl.BlockSpec((tb, D), lambda i: (i, 0)),           # x tile (ragged tail OK)
            pl.BlockSpec((K, D), lambda i: (0, 0)),            # V.T (resident)
            pl.BlockSpec((1, D), lambda i: (0, 0)),            # linear weight (resident)
            pl.BlockSpec((1, D), lambda i: (0, 0)),            # -0.5*sum_k V^2 (resident)
            pl.BlockSpec((1, 1), lambda i: (0, 0),
                         memory_space=pltpu.SMEM),             # bias scalar
        ],
        out_specs=pl.BlockSpec((1, tb), lambda i: (i, 0)),     # lane-dense row
        compiler_params=pltpu.CompilerParams(
            dimension_semantics=("parallel",),                 # shard B over TCs
            vmem_limit_bytes=48 * 1024 * 1024),                # big tiles on v5e too
        cost_estimate=cost,
    )(x, vt, w_lin, nr, b2)

    # (grid, tb) -> (B, 1); rows past B (garbage from the ragged last block)
    # are dropped here.  All in-kernel math is strictly per-row, so those rows
    # cannot contaminate valid outputs.
    return out.reshape(grid * tb, 1)[:B]
    # TODO(synk): for D >> a few hundred add an "arbitrary" contraction-axis
    # grid dim with a VMEM f32 accumulator; if f32 input parity can be relaxed,
    # feed x as bf16 and upcast in-kernel to beat the f32 HBM roofline.


def reference_fm(x, w_lin, b_lin, V):
    linear_part = x @ w_lin.T + b_lin[0]
    interaction = 0.5 * jnp.sum((x @ V) ** 2 - (x * x) @ (V * V),
                                axis=1, keepdims=True)
    return jax.nn.sigmoid(linear_part + interaction)


if __name__ == "__main__":
    key = jax.random.PRNGKey(0)
    k_x, k_w, k_b, k_v = jax.random.split(key, 4)

    B, D, K = 8, 32, 16   # small shapes: batch=8, input_dim=32, factor dim k=16

    x = jax.random.normal(k_x, (B, D), dtype=jnp.float32)
    # nn.Linear(input_dim, 1): weight (1, D), bias (1,)
    w_lin = jax.random.normal(k_w, (1, D), dtype=jnp.float32) * 0.1
    b_lin = jax.random.normal(k_b, (1,), dtype=jnp.float32) * 0.1
    # self.V = nn.Parameter(torch.randn(input_dim, k)); scaled for a numerically
    # sensitive (non-saturated sigmoid) test point.
    V = jax.random.normal(k_v, (D, K), dtype=jnp.float32) * 0.1

    fm = jax.jit(factorization_machine)
    out = jax.block_until_ready(fm(x, w_lin, b_lin, V))

    ref = reference_fm(x, w_lin, b_lin, V)
    assert out.shape == (B, 1)
    assert jnp.allclose(out, ref, atol=1e-4, rtol=1e-4), float(
        jnp.max(jnp.abs(out - ref)))

    print("KERNEL_OK")
</pallas_src>

<mosaic_0001>
module attributes {stable_mosaic.version = 11 : i64} {
  func.func @fm_kernel(%arg0: i32, %arg1: memref<128x32xf32, #tpu.memory_space<vmem>>, %arg2: memref<16x32xf32, #tpu.memory_space<vmem>>, %arg3: memref<1x32xf32, #tpu.memory_space<vmem>>, %arg4: memref<1x32xf32, #tpu.memory_space<vmem>>, %arg5: memref<1x1xf32, #tpu.memory_space<smem>>, %arg6: memref<1x128xf32, #tpu.memory_space<vmem>>) attributes {dimension_semantics = [#tpu.dimension_semantics<parallel>], iteration_bounds = array<i64: 1>, scalar_prefetch = 0 : i64, scratch_operands = 0 : i64, tpu.core_type = #tpu.core_type<tc>, window_params = [{transform_indices = @transform_0, window_bounds = array<i64: 128, 32>}, {pipeline_mode = #tpu.pipeline_mode<synchronous>, transform_indices = @transform_1, window_bounds = array<i64: 16, 32>}, {pipeline_mode = #tpu.pipeline_mode<synchronous>, transform_indices = @transform_2, window_bounds = array<i64: 1, 32>}, {pipeline_mode = #tpu.pipeline_mode<synchronous>, transform_indices = @transform_3, window_bounds = array<i64: 1, 32>}, {transform_indices = @transform_4, window_bounds = array<i64: 1, 1>}, {transform_indices = @transform_5, window_bounds = array<i64: 1, 128>}]} {
    %c0 = arith.constant 0 : index
    %c0_0 = arith.constant 0 : index
    %0 = vector.load %arg1[%c0, %c0_0] : memref<128x32xf32, #tpu.memory_space<vmem>>, vector<128x32xf32>
    %c0_1 = arith.constant 0 : index
    %c0_2 = arith.constant 0 : index
    %1 = vector.load %arg2[%c0_1, %c0_2] : memref<16x32xf32, #tpu.memory_space<vmem>>, vector<16x32xf32>
    %cst = arith.constant dense<0.000000e+00> : vector<16x128xf32>
    %2 = tpu.matmul %1, %0, %cst {dimension_numbers = #tpu.dot_dimension_numbers<[1], [1], [0], [0], [0, 0, 1, 0], [], []>} : vector<16x32xf32>, vector<128x32xf32>, vector<16x128xf32> -> vector<16x128xf32>
    %c0_3 = arith.constant 0 : index
    %c0_4 = arith.constant 0 : index
    %3 = vector.load %arg3[%c0_3, %c0_4] : memref<1x32xf32, #tpu.memory_space<vmem>>, vector<1x32xf32>
    %cst_5 = arith.constant dense<0.000000e+00> : vector<1x128xf32>
    %4 = tpu.matmul %3, %0, %cst_5 {dimension_numbers = #tpu.dot_dimension_numbers<[1], [1], [0], [0], [0, 0, 1, 0], [], []>} : vector<1x32xf32>, vector<128x32xf32>, vector<1x128xf32> -> vector<1x128xf32>
    %c0_6 = arith.constant 0 : index
    %c0_7 = arith.constant 0 : index
    %5 = vector.load %arg4[%c0_6, %c0_7] : memref<1x32xf32, #tpu.memory_space<vmem>>, vector<1x32xf32>
    %6 = arith.mulf %0, %0 : vector<128x32xf32>
    %cst_8 = arith.constant dense<0.000000e+00> : vector<1x128xf32>
    %7 = tpu.matmul %5, %6, %cst_8 {dimension_numbers = #tpu.dot_dimension_numbers<[1], [1], [0], [0], [0, 0, 1, 0], [], []>} : vector<1x32xf32>, vector<128x32xf32>, vector<1x128xf32> -> vector<1x128xf32>
    %8 = arith.mulf %2, %2 : vector<16x128xf32>
    %cst_9 = arith.constant dense<0.000000e+00> : vector<128xf32>
    %9 = vector.multi_reduction <add>, %8, %cst_9 [0] : vector<16x128xf32> to vector<128xf32>
    %10 = vector.shape_cast %9 : vector<128xf32> to vector<1x128xf32>
    %cst_10 = arith.constant 5.000000e-01 : f32
    %11 = vector.broadcast %cst_10 : f32 to vector<1x128xf32>
    %12 = arith.mulf %11, %10 : vector<1x128xf32>
    %13 = arith.addf %4, %7 : vector<1x128xf32>
    %14 = arith.addf %13, %12 : vector<1x128xf32>
    %c0_11 = arith.constant 0 : index
    %c0_12 = arith.constant 0 : index
    %15 = memref.load %arg5[%c0_11, %c0_12] : memref<1x1xf32, #tpu.memory_space<smem>>
    %16 = vector.broadcast %15 : f32 to vector<1x128xf32>
    %17 = arith.addf %14, %16 : vector<1x128xf32>
    %18 = arith.negf %17 : vector<1x128xf32>
    %19 = math.exp %18 : vector<1x128xf32>
    %cst_13 = arith.constant 1.000000e+00 : f32
    %20 = vector.broadcast %cst_13 : f32 to vector<1x128xf32>
    %21 = arith.addf %20, %19 : vector<1x128xf32>
    %22 = arith.divf %20, %21 : vector<1x128xf32>
    %c0_14 = arith.constant 0 : index
    %c0_15 = arith.constant 0 : index
    %23 = vector.load %arg6[%c0_14, %c0_15] : memref<1x128xf32, #tpu.memory_space<vmem>>, vector<1x128xf32>
    tpu.vector_store %arg6[%c0_14, %c0_15], %22 {strides = array<i32>} : memref<1x128xf32, #tpu.memory_space<vmem>>, vector<1x128xf32>,
    return
  }
  func.func @transform_0(%arg0: i32) -> (i32, i32) {
    %c0_i32 = arith.constant 0 : i32
    %c0_i32_0 = arith.constant 0 : i32
    return %arg0, %c0_i32 : i32, i32
  }
  func.func @transform_1(%arg0: i32) -> (i32, i32) {
    %c0_i32 = arith.constant 0 : i32
    %c0_i32_0 = arith.constant 0 : i32
    %c0_i32_1 = arith.constant 0 : i32
    return %c0_i32, %c0_i32_0 : i32, i32
  }
  func.func @transform_2(%arg0: i32) -> (i32, i32) {
    %c0_i32 = arith.constant 0 : i32
    %c0_i32_0 = arith.constant 0 : i32
    %c0_i32_1 = arith.constant 0 : i32
    return %c0_i32, %c0_i32_0 : i32, i32
  }
  func.func @transform_3(%arg0: i32) -> (i32, i32) {
    %c0_i32 = arith.constant 0 : i32
    %c0_i32_0 = arith.constant 0 : i32
    %c0_i32_1 = arith.constant 0 : i32
    return %c0_i32, %c0_i32_0 : i32, i32
  }
  func.func @transform_4(%arg0: i32) -> (i32, i32) {
    %c0_i32 = arith.constant 0 : i32
    %c0_i32_0 = arith.constant 0 : i32
    %c0_i32_1 = arith.constant 0 : i32
    return %c0_i32, %c0_i32_0 : i32, i32
  }
  func.func @transform_5(%arg0: i32) -> (i32, i32) {
    %c0_i32 = arith.constant 0 : i32
    %c0_i32_0 = arith.constant 0 : i32
    return %arg0, %c0_i32 : i32, i32
  }
}

</mosaic_0001>

<llo_original>
// kernel: factorization_machine.1
$region0: #{factorization_machine.1}
  #allocation0 [shape = 'u32[]', space=smem, size = 0x4, offset = 0x4, fixed_abs, tag = 'smem constant byte address 0x4 - core index']
  #allocation1 [shape = 'u32[144,128]{1,0:T(1,128)}', space=vmem, size = 0x12000, scoped, tag = 'internal scratch']
  #allocation2 [shape = 'f32[1,1]{1,0:T(1,128)S(6)}', space=smem, size = 0x200, scoped, tag = 'scoped memory for factorization_machine.1']
  %s0 = inlined_call_operand.vmem [shape: f32[128,32], index: 0, kind: input, shape index: {}]
  %s1 = inlined_call_operand.vmem [shape: f32[16,32], index: 1, kind: input, shape index: {}]
  %s2 = inlined_call_operand.vmem [shape: f32[1,32], index: 2, kind: input, shape index: {}]
  %s3 = inlined_call_operand.vmem [shape: f32[1,32], index: 3, kind: input, shape index: {}]
  %s4 = inlined_call_operand.<no memory space> [shape: f32[1,1], index: 4, kind: input, shape index: {}]
  %s5 = inlined_call_operand.vmem [shape: f32[1,128], index: 5, kind: output, shape index: {}]
  %s6 = sld [smem:[#allocation0]]
  $region30: #{factorization_machine.1} parent=0
    _
  %s8 = ssub.s32 1, %s6
  %s9 = scalar_select 0, %s8, %s6
  %10 = sst [smem:[#allocation2]] %s4
  // Predicated region
  $region2: #{factorization_machine.1} parent=0 // pred_check
    _
  $region3: #{factorization_machine.1} parent=0 // pred_check_branch
    %12 = sbr.rel (0) target = $region5
  $region4: #{factorization_machine.1} parent=0 // pred_region
    _
  $region5: #{factorization_machine.1} parent=0 // pred_fallthru
    _
  // Predicated region
  $region6: #{factorization_machine.1} parent=0 // pred_check
    _
  $region7: #{factorization_machine.1} parent=0 // pred_check_branch
    %14 = sbr.rel (0) target = $region9
  $region8: #{factorization_machine.1} parent=0 // pred_region
    _
  $region9: #{factorization_machine.1} parent=0 // pred_fallthru
    _
  // Predicated region
  $region10: #{factorization_machine.1} parent=0 // pred_check
    _
  $region11: #{factorization_machine.1} parent=0 // pred_check_branch
    %16 = sbr.rel (0) target = $region13
  $region12: #{factorization_machine.1} parent=0 // pred_region
    _
  $region13: #{factorization_machine.1} parent=0 // pred_fallthru
    _
  // Predicated region
  $region14: #{factorization_machine.1} parent=0 // pred_check
    _
  $region15: #{factorization_machine.1} parent=0 // pred_check_branch
    %18 = sbr.rel (0) target = $region17
  $region16: #{factorization_machine.1} parent=0 // pred_region
    _
  $region17: #{factorization_machine.1} parent=0 // pred_fallthru
    _
  // Predicated region
  $region18: #{factorization_machine.1} parent=0 // pred_check
    _
  $region19: #{factorization_machine.1} parent=0 // pred_check_branch
    %20 = sbr.rel (0) target = $region21
  $region20: #{factorization_machine.1} parent=0 // pred_region
    _
  $region21: #{factorization_machine.1} parent=0 // pred_fallthru
    _
  %v21 = vld [vmem:[%s0] sm:$0xff]
  %v22 = vld [vmem:[%s0 + $0x8] sm:$0xff]
  %v23 = vld [vmem:[%s0 + $0x10] sm:$0xff]
  %v24 = vld [vmem:[%s0 + $0x18] sm:$0xff]
  %v25 = vld [vmem:[%s0 + $0x20] sm:$0xff]
  %v26 = vld [vmem:[%s0 + $0x28] sm:$0xff]
  %v27 = vld [vmem:[%s0 + $0x30] sm:$0xff]
  %v28 = vld [vmem:[%s0 + $0x38] sm:$0xff]
  %v29 = vld [vmem:[%s0 + $0x40] sm:$0xff]
  %v30 = vld [vmem:[%s0 + $0x48] sm:$0xff]
  %v31 = vld [vmem:[%s0 + $0x50] sm:$0xff]
  %v32 = vld [vmem:[%s0 + $0x58] sm:$0xff]
  %v33 = vld [vmem:[%s0 + $0x60] sm:$0xff]
  %v34 = vld [vmem:[%s0 + $0x68] sm:$0xff]
  %v35 = vld [vmem:[%s0 + $0x70] sm:$0xff]
  %v36 = vld [vmem:[%s0 + $0x78] sm:$0xff]
  %v37 = vld [vmem:[%s1] sm:$0xff]
  %v38 = vld [vmem:[%s1 + $0x8] sm:$0xff]
  %vm39 = vcmask 261120
  %v41 = vsel %vm39, %v37, 0
  %v44 = vsel %vm39, %v38, 0
  %v47 = vsel %vm39, %v21, 0
  %v50 = vsel %vm39, %v22, 0
  %v53 = vsel %vm39, %v23, 0
  %v56 = vsel %vm39, %v24, 0
  %v59 = vsel %vm39, %v25, 0
  %v62 = vsel %vm39, %v26, 0
  %v65 = vsel %vm39, %v27, 0
  %v68 = vsel %vm39, %v28, 0
  %v71 = vsel %vm39, %v29, 0
  %v74 = vsel %vm39, %v30, 0
  %v77 = vsel %vm39, %v31, 0
  %v80 = vsel %vm39, %v32, 0
  %v83 = vsel %vm39, %v33, 0
  %v86 = vsel %vm39, %v34, 0
  %v89 = vsel %vm39, %v35, 0
  %v92 = vsel %vm39, %v36, 0
  %94 = vmatprep.subr.mxu0 0.0
  %95 = vmatpush1.xpose.msra.mxu0 %v92
  %96 = vmatprep.subr.mxu0 0.0
  %97 = vmatpush1.xpose.msra.mxu0 %v89
  %98 = vmatprep.subr.mxu0 0.0
  %99 = vmatpush1.xpose.msra.mxu0 %v86
  %100 = vmatprep.subr.mxu0 0.0
  %101 = vmatpush1.xpose.msra.mxu0 %v83
  %102 = vmatprep.subr.mxu0 0.0
  %103 = vmatpush1.xpose.msra.mxu0 %v80
  %104 = vmatprep.subr.mxu0 0.0
  %105 = vmatpush1.xpose.msra.mxu0 %v77
  %106 = vmatprep.subr.mxu0 0.0
  %107 = vmatpush1.xpose.msra.mxu0 %v74
  %108 = vmatprep.subr.mxu0 0.0
  %109 = vmatpush1.xpose.msra.mxu0 %v71
  %110 = vmatprep.subr.mxu0 0.0
  %111 = vmatpush1.xpose.msra.mxu0 %v68
  %112 = vmatprep.subr.mxu0 0.0
  %113 = vmatpush1.xpose.msra.mxu0 %v65
  %114 = vmatprep.subr.mxu0 0.0
  %115 = vmatpush1.xpose.msra.mxu0 %v62
  %116 = vmatprep.subr.mxu0 0.0
  %117 = vmatpush1.xpose.msra.mxu0 %v59
  %118 = vmatprep.subr.mxu0 0.0
  %119 = vmatpush1.xpose.msra.mxu0 %v56
  %120 = vmatprep.subr.mxu0 0.0
  %121 = vmatpush1.xpose.msra.mxu0 %v53
  %122 = vmatprep.subr.mxu0 0.0
  %123 = vmatpush1.xpose.msra.mxu0 %v50
  %124 = vmatprep.subr.mxu0 0.0
  %125 = vmatpush1.xpose.msra.mxu0 %v47
  %126 = vmatprep.subr.mxu0 0.0
  %127 = vmatpush2.xpose.msra.mxu0 0.0
  %128 = vmatprep.subr.mxu0 0.0
  %129 = vmatpush2.xpose.msra.mxu0 0.0
  %130 = vmatprep.subr.mxu0 0.0
  %131 = vmatpush2.xpose.msra.mxu0 0.0
  %132 = vmatprep.subr.mxu0 0.0
  %133 = vmatpush2.xpose.msra.mxu0 0.0
  %134 = vmatprep.subr.mxu0 0.0
  %135 = vmatpush2.xpose.msra.mxu0 0.0
  %136 = vmatprep.subr.mxu0 0.0
  %137 = vmatpush2.xpose.msra.mxu0 0.0
  %138 = vmatprep.subr.mxu0 0.0
  %139 = vmatpush2.xpose.msra.mxu0 0.0
  %140 = vmatprep.subr.mxu0 0.0
  %141 = vmatpush2.xpose.msra.mxu0 0.0
  %142 = vmatprep.subr.mxu0 0.0
  %143 = vmatpush2.xpose.msra.mxu0 0.0
  %144 = vmatprep.subr.mxu0 0.0
  %145 = vmatpush2.xpose.msra.mxu0 0.0
  %146 = vmatprep.subr.mxu0 0.0
  %147 = vmatpush2.xpose.msra.mxu0 0.0
  %148 = vmatprep.subr.mxu0 0.0
  %149 = vmatpush2.xpose.msra.mxu0 0.0
  %150 = vmatprep.subr.mxu0 0.0
  %151 = vmatpush2.xpose.msra.mxu0 0.0
  %152 = vmatprep.subr.mxu0 0.0
  %153 = vmatpush2.xpose.msra.mxu0 0.0
  %154 = vmatprep.subr.mxu0 0.0
  %155 = vmatpush2.xpose.msra.mxu0 0.0
  %156 = vmatprep.subr.mxu0 0.0
  %157 = vmatpush2.xpose.msra.mxu0 0.0
  %158 = vmatprep.mubr.f32.mxu0 0.0
  %159 = vmatmul.mubr.f32.gmra.mxu0 %v41
  %v160 = vpop.f32.mrf.mxu0
  %v161 = vadd.f32 0.0, %v160
  %v162 = vpop.f32.mrf.mxu0
  %163 = vmatprep.mubr.f32.mxu0 0.0
  %164 = vmatmul.mubr.f32.gmra.mxu0 %v44
  %v165 = vpop.f32.mrf.mxu0
  %v166 = vadd.f32 0.0, %v165
  %v167 = vpop.f32.mrf.mxu0
  %168 = vdwg.mxu0
  %v169 = vld [vmem:[%s2] sm:$0x1]
  %v170 = vld [vmem:[%s3] sm:$0x1]
  %v171 = vmul.f32 %v21, %v21
  %v172 = vmul.f32 %v22, %v22
  %v173 = vmul.f32 %v23, %v23
  %v174 = vmul.f32 %v24, %v24
  %v175 = vmul.f32 %v25, %v25
  %v176 = vmul.f32 %v26, %v26
  %v177 = vmul.f32 %v27, %v27
  %v178 = vmul.f32 %v28, %v28
  %v179 = vmul.f32 %v29, %v29
  %v180 = vmul.f32 %v30, %v30
  %v181 = vmul.f32 %v31, %v31
  %v182 = vmul.f32 %v32, %v32
  %v183 = vmul.f32 %v33, %v33
  %v184 = vmul.f32 %v34, %v34
  %v185 = vmul.f32 %v35, %v35
  %v186 = vmul.f32 %v36, %v36
  %v188 = vsel %vm39, %v170, 0
  %v191 = vsel %vm39, %v171, 0
  %v194 = vsel %vm39, %v172, 0
  %v197 = vsel %vm39, %v173, 0
  %v200 = vsel %vm39, %v174, 0
  %v203 = vsel %vm39, %v175, 0
  %v206 = vsel %vm39, %v176, 0
  %v209 = vsel %vm39, %v177, 0
  %v212 = vsel %vm39, %v178, 0
  %v215 = vsel %vm39, %v179, 0
  %v218 = vsel %vm39, %v180, 0
  %v221 = vsel %vm39, %v181, 0
  %v224 = vsel %vm39, %v182, 0
  %v227 = vsel %vm39, %v183, 0
  %v230 = vsel %vm39, %v184, 0
  %v233 = vsel %vm39, %v185, 0
  %v236 = vsel %vm39, %v186, 0
  %238 = vmatprep.subr.mxu0 0.0
  %239 = vmatpush1.xpose.msra.mxu0 %v236
  %240 = vmatprep.subr.mxu0 0.0
  %241 = vmatpush1.xpose.msra.mxu0 %v233
  %242 = vmatprep.subr.mxu0 0.0
  %243 = vmatpush1.xpose.msra.mxu0 %v230
  %244 = vmatprep.subr.mxu0 0.0
  %245 = vmatpush1.xpose.msra.mxu0 %v227
  %246 = vmatprep.subr.mxu0 0.0
  %247 = vmatpush1.xpose.msra.mxu0 %v224
  %248 = vmatprep.subr.mxu0 0.0
  %249 = vmatpush1.xpose.msra.mxu0 %v221
  %250 = vmatprep.subr.mxu0 0.0
  %251 = vmatpush1.xpose.msra.mxu0 %v218
  %252 = vmatprep.subr.mxu0 0.0
  %253 = vmatpush1.xpose.msra.mxu0 %v215
  %254 = vmatprep.subr.mxu0 0.0
  %255 = vmatpush1.xpose.msra.mxu0 %v212
  %256 = vmatprep.subr.mxu0 0.0
  %257 = vmatpush1.xpose.msra.mxu0 %v209
  %258 = vmatprep.subr.mxu0 0.0
  %259 = vmatpush1.xpose.msra.mxu0 %v206
  %260 = vmatprep.subr.mxu0 0.0
  %261 = vmatpush1.xpose.msra.mxu0 %v203
  %262 = vmatprep.subr.mxu0 0.0
  %263 = vmatpush1.xpose.msra.mxu0 %v200
  %264 = vmatprep.subr.mxu0 0.0
  %265 = vmatpush1.xpose.msra.mxu0 %v197
  %266 = vmatprep.subr.mxu0 0.0
  %267 = vmatpush1.xpose.msra.mxu0 %v194
  %268 = vmatprep.subr.mxu0 0.0
  %269 = vmatpush1.xpose.msra.mxu0 %v191
  %270 = vmatprep.subr.mxu0 0.0
  %271 = vmatpush2.xpose.msra.mxu0 0.0
  %272 = vmatprep.subr.mxu0 0.0
  %273 = vmatpush2.xpose.msra.mxu0 0.0
  %274 = vmatprep.subr.mxu0 0.0
  %275 = vmatpush2.xpose.msra.mxu0 0.0
  %276 = vmatprep.subr.mxu0 0.0
  %277 = vmatpush2.xpose.msra.mxu0 0.0
  %278 = vmatprep.subr.mxu0 0.0
  %279 = vmatpush2.xpose.msra.mxu0 0.0
  %280 = vmatprep.subr.mxu0 0.0
  %281 = vmatpush2.xpose.msra.mxu0 0.0
  %282 = vmatprep.subr.mxu0 0.0
  %283 = vmatpush2.xpose.msra.mxu0 0.0
  %284 = vmatprep.subr.mxu0 0.0
  %285 = vmatpush2.xpose.msra.mxu0 0.0
  %286 = vmatprep.subr.mxu0 0.0
  %287 = vmatpush2.xpose.msra.mxu0 0.0
  %288 = vmatprep.subr.mxu0 0.0
  %289 = vmatpush2.xpose.msra.mxu0 0.0
  %290 = vmatprep.subr.mxu0 0.0
  %291 = vmatpush2.xpose.msra.mxu0 0.0
  %292 = vmatprep.subr.mxu0 0.0
  %293 = vmatpush2.xpose.msra.mxu0 0.0
  %294 = vmatprep.subr.mxu0 0.0
  %295 = vmatpush2.xpose.msra.mxu0 0.0
  %296 = vmatprep.subr.mxu0 0.0
  %297 = vmatpush2.xpose.msra.mxu0 0.0
  %298 = vmatprep.subr.mxu0 0.0
  %299 = vmatpush2.xpose.msra.mxu0 0.0
  %300 = vmatprep.subr.mxu0 0.0
  %301 = vmatpush2.xpose.msra.mxu0 0.0
  %302 = vmatprep.mubr.f32.mxu0 0.0
  %303 = vmatmul.mubr.f32.gmra.mxu0 %v188
  %v304 = vpop.f32.mrf.mxu0
  %v305 = vadd.f32 0.0, %v304
  %v306 = vpop.f32.mrf.mxu0
  %307 = vdwg.mxu0
  %v308 = vmul.f32 %v161, %v161
  %v309 = vmul.f32 %v166, %v166
  %v310 = vadd.f32 %v308, %v309
  %v311 = vrot.slane %v310, 4
  %v312 = vadd.f32 %v310, %v311
  %v313 = vrot.slane %v312, 2
  %v314 = vadd.f32 %v312, %v313
  %v315 = vrot.slane %v314, 1
  %v316 = vadd.f32 %v314, %v315
  %v317 = vmul.f32 %v316, 0.5
  %v319 = vsel %vm39, %v169, 0
  %321 = vmatprep.subr.mxu0 0.0
  %322 = vmatpush1.xpose.msra.mxu0 %v92
  %323 = vmatprep.subr.mxu0 0.0
  %324 = vmatpush1.xpose.msra.mxu0 %v89
  %325 = vmatprep.subr.mxu0 0.0
  %326 = vmatpush1.xpose.msra.mxu0 %v86
  %327 = vmatprep.subr.mxu0 0.0
  %328 = vmatpush1.xpose.msra.mxu0 %v83
  %329 = vmatprep.subr.mxu0 0.0
  %330 = vmatpush1.xpose.msra.mxu0 %v80
  %331 = vmatprep.subr.mxu0 0.0
  %332 = vmatpush1.xpose.msra.mxu0 %v77
  %333 = vmatprep.subr.mxu0 0.0
  %334 = vmatpush1.xpose.msra.mxu0 %v74
  %335 = vmatprep.subr.mxu0 0.0
  %336 = vmatpush1.xpose.msra.mxu0 %v71
  %337 = vmatprep.subr.mxu0 0.0
  %338 = vmatpush1.xpose.msra.mxu0 %v68
  %339 = vmatprep.subr.mxu0 0.0
  %340 = vmatpush1.xpose.msra.mxu0 %v65
  %341 = vmatprep.subr.mxu0 0.0
  %342 = vmatpush1.xpose.msra.mxu0 %v62
  %343 = vmatprep.subr.mxu0 0.0
  %344 = vmatpush1.xpose.msra.mxu0 %v59
  %345 = vmatprep.subr.mxu0 0.0
  %346 = vmatpush1.xpose.msra.mxu0 %v56
  %347 = vmatprep.subr.mxu0 0.0
  %348 = vmatpush1.xpose.msra.mxu0 %v53
  %349 = vmatprep.subr.mxu0 0.0
  %350 = vmatpush1.xpose.msra.mxu0 %v50
  %351 = vmatprep.subr.mxu0 0.0
  %352 = vmatpush1.xpose.msra.mxu0 %v47
  %353 = vmatprep.subr.mxu0 0.0
  %354 = vmatpush2.xpose.msra.mxu0 0.0
  %355 = vmatprep.subr.mxu0 0.0
  %356 = vmatpush2.xpose.msra.mxu0 0.0
  %357 = vmatprep.subr.mxu0 0.0
  %358 = vmatpush2.xpose.msra.mxu0 0.0
  %359 = vmatprep.subr.mxu0 0.0
  %360 = vmatpush2.xpose.msra.mxu0 0.0
  %361 = vmatprep.subr.mxu0 0.0
  %362 = vmatpush2.xpose.msra.mxu0 0.0
  %363 = vmatprep.subr.mxu0 0.0
  %364 = vmatpush2.xpose.msra.mxu0 0.0
  %365 = vmatprep.subr.mxu0 0.0
  %366 = vmatpush2.xpose.msra.mxu0 0.0
  %367 = vmatprep.subr.mxu0 0.0
  %368 = vmatpush2.xpose.msra.mxu0 0.0
  %369 = vmatprep.subr.mxu0 0.0
  %370 = vmatpush2.xpose.msra.mxu0 0.0
  %371 = vmatprep.subr.mxu0 0.0
  %372 = vmatpush2.xpose.msra.mxu0 0.0
  %373 = vmatprep.subr.mxu0 0.0
  %374 = vmatpush2.xpose.msra.mxu0 0.0
  %375 = vmatprep.subr.mxu0 0.0
  %376 = vmatpush2.xpose.msra.mxu0 0.0
  %377 = vmatprep.subr.mxu0 0.0
  %378 = vmatpush2.xpose.msra.mxu0 0.0
  %379 = vmatprep.subr.mxu0 0.0
  %380 = vmatpush2.xpose.msra.mxu0 0.0
  %381 = vmatprep.subr.mxu0 0.0
  %382 = vmatpush2.xpose.msra.mxu0 0.0
  %383 = vmatprep.subr.mxu0 0.0
  %384 = vmatpush2.xpose.msra.mxu0 0.0
  %385 = vmatprep.mubr.f32.mxu0 0.0
  %386 = vmatmul.mubr.f32.gmra.mxu0 %v319
  %v387 = vpop.f32.mrf.mxu0
  %v388 = vadd.f32 %v305, %v387
  %v389 = vpop.f32.mrf.mxu0
  %390 = vdwg.mxu0
  %v391 = vadd.f32 %v388, %v317
  %s392 = sld [smem:[#allocation2]]
  %v393 = vstv %s392
  %v394 = vadd.f32 %v391, %v393
  %v395 = vxor.u32 %v394, 2147483648
  %v396 = vmul.f32 %v395, 1.442695
  %v397 = vpow.pop %v396
  %v398 = vadd.f32 %v397, 1.0
  %v399 = vrcp.pop %v398
  %v400 = vmul.f32 1.0, %v399
  %401 = vst [vmem:[%s5] sm:$0x1] %v400
  // Predicated region
  $region22: #{factorization_machine.1} parent=0 // pred_check
    _
  $region23: #{factorization_machine.1} parent=0 // pred_check_branch
    %403 = sbr.rel (0) target = $region25
  $region24: #{factorization_machine.1} parent=0 // pred_region
    _
  $region25: #{factorization_machine.1} parent=0 // pred_fallthru
    _
  // Predicated region
  $region26: #{factorization_machine.1} parent=0 // pred_check
    _
  $region27: #{factorization_machine.1} parent=0 // pred_check_branch
    %405 = sbr.rel (0) target = $region29
  $region28: #{factorization_machine.1} parent=0 // pred_region
    _
  $region29: #{factorization_machine.1} parent=0 // pred_fallthru
    _

</llo_original>
